<compile_context>
chip_gen: v7x
topology: tpu7x:2x2x1
jax: 0.10.0
libtpu: 0.0.40
codegen_flags: <defaults>
</compile_context>

<pallas_src>
import functools

import jax
import jax.numpy as jnp
from jax.experimental import pallas as pl
from jax.experimental.pallas import tpu as pltpu

NUM_CLASS = 10      # Config.num_classes for FMNIST
LINEAR_DIM = 64     # linear_dim default of fea_to_NT


def _round_up(a, m):
    return -(-a // m) * m


def _fea_to_nt_kernel(x_ref, w_ref, b_ref, g_ref, o_ref, *, no_softmax):
    # Linear: bf16 x bf16 -> f32 accumulation on the MXU (single pass),
    # result stays lane-dense (TB, N).
    logits = jnp.dot(x_ref[...], w_ref[...],
                     preferred_element_type=jnp.float32)
    logits = logits + b_ref[...]                       # (TB, N) + (1, N), f32
    if no_softmax:
        o_ref[...] = logits.astype(o_ref.dtype)
        return
    # Softmax over each contiguous group of `num_class` lanes, done flat.
    # Subtracting the *global* per-row max is valid for every group (any
    # per-row constant cancels); exp runs on the EUP in f32.
    m = jnp.max(logits, axis=-1, keepdims=True)
    e = jnp.exp(logits - m)                            # f32, (TB, N)
    # Per-group-of-C sums, broadcast back across each group's lanes, via one
    # bf16 MXU pass with the precomputed block-diagonal ones matrix.
    s = jnp.dot(e.astype(jnp.bfloat16), g_ref[...],
                preferred_element_type=jnp.float32)
    # Clamp (so a fully underflowed group yields 0, not NaN) and use the
    # exact reciprocal: VALU/EUP have slack (MXU is the bottleneck) and rows
    # then sum to 1 at f32 precision.
    inv = pl.reciprocal(jnp.maximum(s, 1e-30))
    o_ref[...] = (e * inv).astype(o_ref.dtype)


def fea_to_nt(x, weight, bias, *, num_class=NUM_CLASS, no_softmax=False,
              block_rows=2048):
    """Forward pass of fea_to_NT.

    x:      (B, linear_dim)            float32
    weight: (linear_dim, num_class^2)  (torch Linear weight transposed)
    bias:   (num_class^2,)
    returns (B, num_class, num_class)
    """
    B, D = x.shape
    N = num_class * num_class
    assert weight.shape == (D, N)
    assert bias.shape == (N,)
    out_dtype = x.dtype

    # ---- batch tiling ------------------------------------------------------
    b8 = _round_up(B, 8)
    # n_steps: respect the block_rows cap, and use >= 2 steps whenever the
    # batch allows so the "parallel" grid axis can feed both v7x TensorCores.
    # TB ~= ceil(B / n_steps) keeps batch-padding waste small.
    n_steps = max(-(-b8 // block_rows), 2 if b8 >= 16 else 1)
    TB = _round_up(-(-b8 // n_steps), 8)
    n_steps = -(-b8 // TB)
    B_pad = n_steps * TB
    if B_pad != B:
        x = jnp.pad(x, ((0, B_pad - B), (0, 0)))

    # ---- operand prep (wrapper side, cheap in XLA) --------------------------
    # bf16 MXU inputs: one MXU pass per dot, half the x/weight HBM bytes.
    x_bf = x.astype(jnp.bfloat16)
    w_bf = weight.astype(jnp.bfloat16)
    b_f32 = bias.reshape(1, N).astype(jnp.float32)
    # Block-diagonal ones matrix (values 0/1 -> lossless in bf16):
    # ones[i, j] = 1 iff columns i, j belong to the same group of num_class.
    grp = jnp.arange(N, dtype=jnp.int32) // num_class
    blkdiag = (grp[:, None] == grp[None, :]).astype(jnp.bfloat16)

    kernel = functools.partial(_fea_to_nt_kernel, no_softmax=no_softmax)
    out_flat = pl.pallas_call(
        kernel,
        out_shape=jax.ShapeDtypeStruct((B_pad, N), out_dtype),
        grid=(n_steps,),
        in_specs=[
            pl.BlockSpec((TB, D), lambda i: (i, 0)),     # x tile, pipelined
            pl.BlockSpec((D, N), lambda i: (0, 0)),      # weight, VMEM-resident
            pl.BlockSpec((1, N), lambda i: (0, 0)),      # bias,   VMEM-resident
            pl.BlockSpec((N, N), lambda i: (0, 0)),      # block-diag ones
        ],
        out_specs=pl.BlockSpec((TB, N), lambda i: (i, 0)),
        compiler_params=pltpu.CompilerParams(
            dimension_semantics=("parallel",)),
    )(x_bf, w_bf, b_f32, blkdiag)

    # Lane-dense kernel output; reshape to (B, C, C) in the wrapper (free).
    return out_flat[:B].reshape(B, num_class, num_class)


def _init_params(key, in_dim, out_dim):
    # Deterministic init mimicking torch.nn.Linear default:
    # U(-1/sqrt(in_dim), 1/sqrt(in_dim)) for both weight and bias.
    kw, kb = jax.random.split(key)
    bound = 1.0 / (in_dim ** 0.5)
    w = jax.random.uniform(kw, (in_dim, out_dim), jnp.float32, -bound, bound)
    b = jax.random.uniform(kb, (out_dim,), jnp.float32, -bound, bound)
    return w, b


if __name__ == "__main__":
    key = jax.random.PRNGKey(0)
    kx, kp = jax.random.split(key)

    B, C = 8, NUM_CLASS
    N = C * C
    x = jax.random.normal(kx, (B, LINEAR_DIM), dtype=jnp.float32)
    w, b = _init_params(kp, LINEAR_DIM, N)

    # References: full-f32, and a bf16-input one matching the kernel's
    # pinned MXU input precision.
    ref_logits_f32 = x @ w + b
    ref = jax.nn.softmax(ref_logits_f32.reshape(B, C, C), axis=-1)
    x_bf = x.astype(jnp.bfloat16).astype(jnp.float32)
    w_bf = w.astype(jnp.bfloat16).astype(jnp.float32)
    ref_logits_bf = (x_bf @ w_bf + b).reshape(B, C, C)

    # Softmax path.
    out = jax.block_until_ready(fea_to_nt(x, w, b))
    assert out.shape == (B, C, C)
    assert jnp.allclose(out, ref, atol=5e-3, rtol=5e-3)
    assert jnp.allclose(out.sum(-1), jnp.ones((B, C)), atol=5e-3)

    # no_softmax path (raw logits) vs the bf16-input reference.
    out_ns = jax.block_until_ready(fea_to_nt(x, w, b, no_softmax=True))
    assert jnp.allclose(out_ns, ref_logits_bf, atol=1e-4, rtol=1e-4)

    # Ragged batch (exercises batch padding + output slice).
    out_ragged = jax.block_until_ready(fea_to_nt(x[:6], w, b))
    assert jnp.allclose(out_ragged, ref[:6], atol=5e-3, rtol=5e-3)

    # Multi-step grid (B=30 -> 2 parallel grid steps, TB=16).
    B2 = 30
    x2 = jax.random.normal(jax.random.PRNGKey(1), (B2, LINEAR_DIM),
                           dtype=jnp.float32)
    out2 = jax.block_until_ready(fea_to_nt(x2, w, b))
    ref2 = jax.nn.softmax((x2 @ w + b).reshape(B2, C, C), axis=-1)
    assert jnp.allclose(out2, ref2, atol=5e-3, rtol=5e-3)
    assert jnp.allclose(out2.sum(-1), jnp.ones((B2, C)), atol=5e-3)

    print("KERNEL_OK")
</pallas_src>

<mosaic_0001>
module attributes {stable_mosaic.version = 11 : i64} {
  func.func @_fea_to_nt_kernel(%arg0: i32, %arg1: memref<8x64xbf16, #tpu.memory_space<vmem>>, %arg2: memref<64x100xbf16, #tpu.memory_space<vmem>>, %arg3: memref<1x100xf32, #tpu.memory_space<vmem>>, %arg4: memref<100x100xbf16, #tpu.memory_space<vmem>>, %arg5: memref<8x100xf32, #tpu.memory_space<vmem>>) attributes {dimension_semantics = [#tpu.dimension_semantics<parallel>], iteration_bounds = array<i64: 1>, scalar_prefetch = 0 : i64, scratch_operands = 0 : i64, tpu.core_type = #tpu.core_type<tc>, window_params = [{transform_indices = @transform_0, window_bounds = array<i64: 8, 64>}, {pipeline_mode = #tpu.pipeline_mode<synchronous>, transform_indices = @transform_1, window_bounds = array<i64: 64, 100>}, {pipeline_mode = #tpu.pipeline_mode<synchronous>, transform_indices = @transform_2, window_bounds = array<i64: 1, 100>}, {pipeline_mode = #tpu.pipeline_mode<synchronous>, transform_indices = @transform_3, window_bounds = array<i64: 100, 100>}, {transform_indices = @transform_4, window_bounds = array<i64: 8, 100>}]} {
    %c0 = arith.constant 0 : index
    %c0_0 = arith.constant 0 : index
    %0 = vector.load %arg1[%c0, %c0_0] : memref<8x64xbf16, #tpu.memory_space<vmem>>, vector<8x64xbf16>
    %c0_1 = arith.constant 0 : index
    %c0_2 = arith.constant 0 : index
    %1 = vector.load %arg2[%c0_1, %c0_2] : memref<64x100xbf16, #tpu.memory_space<vmem>>, vector<64x100xbf16>
    %cst = arith.constant dense<0.000000e+00> : vector<8x100xf32>
    %2 = tpu.matmul %0, %1, %cst {dimension_numbers = #tpu.dot_dimension_numbers<[1], [0], [0], [1], [0, 0, 1, 1], [], []>} : vector<8x64xbf16>, vector<64x100xbf16>, vector<8x100xf32> -> vector<8x100xf32>
    %c0_3 = arith.constant 0 : index
    %c0_4 = arith.constant 0 : index
    %3 = vector.load %arg3[%c0_3, %c0_4] : memref<1x100xf32, #tpu.memory_space<vmem>>, vector<1x100xf32>
    %4 = vector.broadcast %3 : vector<1x100xf32> to vector<8x100xf32>
    %5 = arith.addf %2, %4 : vector<8x100xf32>
    %cst_5 = arith.constant dense<0xFF800000> : vector<8xf32>
    %6 = vector.multi_reduction <maximumf>, %5, %cst_5 [1] : vector<8x100xf32> to vector<8xf32>
    %7 = vector.shape_cast %6 : vector<8xf32> to vector<8x1xf32>
    %8 = vector.broadcast %7 : vector<8x1xf32> to vector<8x100xf32>
    %9 = arith.subf %5, %8 : vector<8x100xf32>
    %10 = math.exp %9 : vector<8x100xf32>
    %11 = arith.truncf %10 : vector<8x100xf32> to vector<8x100xbf16>
    %c0_6 = arith.constant 0 : index
    %c0_7 = arith.constant 0 : index
    %12 = vector.load %arg4[%c0_6, %c0_7] : memref<100x100xbf16, #tpu.memory_space<vmem>>, vector<100x100xbf16>
    %cst_8 = arith.constant dense<0.000000e+00> : vector<8x100xf32>
    %13 = tpu.matmul %11, %12, %cst_8 {dimension_numbers = #tpu.dot_dimension_numbers<[1], [0], [0], [1], [0, 0, 1, 1], [], []>} : vector<8x100xbf16>, vector<100x100xbf16>, vector<8x100xf32> -> vector<8x100xf32>
    %cst_9 = arith.constant 1.000000e-30 : f32
    %14 = vector.broadcast %cst_9 : f32 to vector<8x100xf32>
    %15 = arith.maximumf %13, %14 : vector<8x100xf32>
    %16 = tpu.reciprocal %15 : vector<8x100xf32> -> vector<8x100xf32>
    %17 = arith.mulf %10, %16 : vector<8x100xf32>
    %c0_10 = arith.constant 0 : index
    %c0_11 = arith.constant 0 : index
    %18 = vector.load %arg5[%c0_10, %c0_11] : memref<8x100xf32, #tpu.memory_space<vmem>>, vector<8x100xf32>
    tpu.vector_store %arg5[%c0_10, %c0_11], %17 {strides = array<i32>} : memref<8x100xf32, #tpu.memory_space<vmem>>, vector<8x100xf32>,
    return
  }
  func.func @transform_0(%arg0: i32) -> (i32, i32) {
    %c0_i32 = arith.constant 0 : i32
    %c0_i32_0 = arith.constant 0 : i32
    return %arg0, %c0_i32 : i32, i32
  }
  func.func @transform_1(%arg0: i32) -> (i32, i32) {
    %c0_i32 = arith.constant 0 : i32
    %c0_i32_0 = arith.constant 0 : i32
    %c0_i32_1 = arith.constant 0 : i32
    return %c0_i32, %c0_i32_0 : i32, i32
  }
  func.func @transform_2(%arg0: i32) -> (i32, i32) {
    %c0_i32 = arith.constant 0 : i32
    %c0_i32_0 = arith.constant 0 : i32
    %c0_i32_1 = arith.constant 0 : i32
    return %c0_i32, %c0_i32_0 : i32, i32
  }
  func.func @transform_3(%arg0: i32) -> (i32, i32) {
    %c0_i32 = arith.constant 0 : i32
    %c0_i32_0 = arith.constant 0 : i32
    %c0_i32_1 = arith.constant 0 : i32
    return %c0_i32, %c0_i32_0 : i32, i32
  }
  func.func @transform_4(%arg0: i32) -> (i32, i32) {
    %c0_i32 = arith.constant 0 : i32
    %c0_i32_0 = arith.constant 0 : i32
    return %arg0, %c0_i32 : i32, i32
  }
}

</mosaic_0001>

<llo_original>
// kernel: tpu_custom_call.1
$region0: #{tpu_custom_call.1}
  #allocation0 [shape = 'u32[]', space=smem, size = 0x4, offset = 0x4, fixed_abs, tag = 'smem constant byte address 0x4 - core index']
  #allocation1 [shape = 'u32[144,128]{1,0:T(1,128)}', space=vmem, size = 0x12000, scoped, tag = 'internal scratch']
  %s0 = inlined_call_operand.hbm [shape: bf16[8,64], index: 0, kind: input, shape index: {}]
  %s1 = inlined_call_operand.hbm [shape: bf16[64,100], index: 1, kind: input, shape index: {}]
  %s2 = inlined_call_operand.vmem [shape: f32[1,100], index: 2, kind: input, shape index: {}]
  %s3 = inlined_call_operand.hbm [shape: bf16[100,100], index: 3, kind: input, shape index: {}]
  %s4 = inlined_call_operand.hbm [shape: f32[8,100], index: 4, kind: output, shape index: {}]
  %s5 = sld [smem:[#allocation0]]
  $region38: #{tpu_custom_call.1} parent=0
    _
  %s7 = ssub.s32 1, %s5
  %s8 = scalar_select 0, %s7, %s5
  $region1: #{tpu_custom_call.1} parent=0
    #allocation2 [shape = 'u8[2048]{0}', space=vmem, size = 0x800, scoped, tag = 'input window, operand 0, single buffered']
    #allocation3 [shape = 's32[1]{0}', space=sflag, size = 0x4, scoped, tag = 'scoped memory for tpu_custom_call.1']
    #allocation4 [shape = 's32[1]{0}', space=sflag, size = 0x4, scoped, tag = 'scoped memory for tpu_custom_call.1']
    #allocation5 [shape = 'u8[16384]{0}', space=vmem, size = 0x4000, scoped, tag = 'input window, operand 1, single buffered']
    #allocation6 [shape = 's32[1]{0}', space=sflag, size = 0x4, scoped, tag = 'scoped memory for tpu_custom_call.1']
    #allocation7 [shape = 'u8[26624]{0}', space=vmem, size = 0x6800, scoped, tag = 'input window, operand 3, single buffered']
    #allocation8 [shape = 'u8[4096]{0}', space=vmem, size = 0x1000, scoped, tag = 'output window, operand 0, single buffered']
    %9 = vsyncpa [#allocation3], 0
    %10 = vsyncpa [#allocation6], 0
    %11 = vsyncpa [#allocation4], 0
    // Predicated region
    $region2: #{tpu_custom_call.1} parent=1 // pred_check
      _
    $region3: #{tpu_custom_call.1} parent=1 // pred_check_branch
      %13 = sbr.rel (0) target = $region5
    $region4: #{tpu_custom_call.1} parent=1 // pred_region
      %s15 = ssub.s32 64, 64
      %16 = vsyncadd [#allocation3], %s15
      %s18 = sshll.u32 [#allocation2], 4
      %s19 = int_to_ptr.vmem [resolvable:$true] %s18
      %21 = dma.hbm_to_vmem [thread:$0]  %s0, 64, %s19, [#allocation3]
    $region5: #{tpu_custom_call.1} parent=1 // pred_fallthru
      _
    // Predicated region
    $region6: #{tpu_custom_call.1} parent=1 // pred_check
      _
    $region7: #{tpu_custom_call.1} parent=1 // pred_check_branch
      %23 = sbr.rel (0) target = $region9
    $region8: #{tpu_custom_call.1} parent=1 // pred_region
      %s25 = ssub.s32 512, 512
      %26 = vsyncadd [#allocation6], %s25
      %s27 = sshll.u32 [#allocation5], 4
      %s28 = int_to_ptr.vmem [resolvable:$true] %s27
      %33 = dma.hbm_to_vmem [thread:$0]  %s1, 512, %s28, [#allocation6], 64, 64, 4
    $region9: #{tpu_custom_call.1} parent=1 // pred_fallthru
      _
    // Predicated region
    $region10: #{tpu_custom_call.1} parent=1 // pred_check
      _
    $region11: #{tpu_custom_call.1} parent=1 // pred_check_branch
      %35 = sbr.rel (0) target = $region13
    $region12: #{tpu_custom_call.1} parent=1 // pred_region
      _
    $region13: #{tpu_custom_call.1} parent=1 // pred_fallthru
      _
    // Predicated region
    $region14: #{tpu_custom_call.1} parent=1 // pred_check
      _
    $region15: #{tpu_custom_call.1} parent=1 // pred_check_branch
      %37 = sbr.rel (0) target = $region17
    $region16: #{tpu_custom_call.1} parent=1 // pred_region
      %s39 = ssub.s32 832, 832
      %40 = vsyncadd [#allocation6], %s39
      %s41 = sshll.u32 [#allocation7], 4
      %s42 = int_to_ptr.vmem [resolvable:$true] %s41
      %47 = dma.hbm_to_vmem [thread:$0]  %s3, 832, %s42, [#allocation6], 64, 64, 4
    $region17: #{tpu_custom_call.1} parent=1 // pred_fallthru
      _
    // Predicated region
    $region18: #{tpu_custom_call.1} parent=1 // pred_check
      _
    $region19: #{tpu_custom_call.1} parent=1 // pred_check_branch
      %49 = sbr.rel (0) target = $region21
    $region20: #{tpu_custom_call.1} parent=1 // pred_region
      %50 = dma.done [#allocation3], 64
    $region21: #{tpu_custom_call.1} parent=1 // pred_fallthru
      _
    // Predicated region
    $region22: #{tpu_custom_call.1} parent=1 // pred_check
      _
    $region23: #{tpu_custom_call.1} parent=1 // pred_check_branch
      %52 = sbr.rel (0) target = $region25
    $region24: #{tpu_custom_call.1} parent=1 // pred_region
      %53 = dma.done [#allocation6], 512
    $region25: #{tpu_custom_call.1} parent=1 // pred_fallthru
      _
    // Predicated region
    $region26: #{tpu_custom_call.1} parent=1 // pred_check
      _
    $region27: #{tpu_custom_call.1} parent=1 // pred_check_branch
      %55 = sbr.rel (0) target = $region29
    $region28: #{tpu_custom_call.1} parent=1 // pred_region
      %56 = dma.done [#allocation6], 832
    $region29: #{tpu_custom_call.1} parent=1 // pred_fallthru
      _
    %v58 = vld [vmem:[#allocation2] sm:$0xf]
    %v59 = vld [vmem:[#allocation5] sm:$0xf]
    %v60 = vld [vmem:[#allocation5 + $0x4] sm:$0xf]
    %v61 = vld [vmem:[#allocation5 + $0x8] sm:$0xf]
    %v62 = vld [vmem:[#allocation5 + $0xc] sm:$0xf]
    %v63 = vld [vmem:[#allocation5 + $0x10] sm:$0xf]
    %v64 = vld [vmem:[#allocation5 + $0x14] sm:$0xf]
    %v65 = vld [vmem:[#allocation5 + $0x18] sm:$0xf]
    %v66 = vld [vmem:[#allocation5 + $0x1c] sm:$0xf]
    %v67 = vld [vmem:[%s2] sm:$0x1]
    %v69 = vlaneseq
    %v70 = vshrl.u32 %v69, 7
    %v71 = vsub.s32 0, %v70
    %v72 = vrot.slane %v67, %v71
    %v82 = vunpack.c.l.b16 %v59
    %v83 = vunpack.c.l.b16 %v60
    %v84 = vunpack.c.l.b16 %v61
    %v85 = vunpack.c.l.b16 %v62
    %v86 = vunpack.c.l.b16 %v63
    %v87 = vunpack.c.l.b16 %v64
    %v88 = vunpack.c.l.b16 %v65
    %v89 = vunpack.c.l.b16 %v66
    %v90 = vpack.c.b16 %v83, %v82
    %v91 = vpack.c.b16 %v85, %v84
    %v92 = vpack.c.b16 %v87, %v86
    %v93 = vpack.c.b16 %v89, %v88
    %vm98 = vcmask 523264
    %v100 = vsel %vm98, %v58, 0
    %102 = vmatprep.subr.bf16.mxu0 0
    %103 = vmatpush1.bf16.msra.mxu0 %v90
    %104 = vmatprep.subr.bf16.mxu0 0
    %105 = vmatpush1.bf16.msra.mxu0 %v91
    %106 = vmatprep.subr.bf16.mxu0 0
    %107 = vmatpush1.bf16.msra.mxu0 %v92
    %108 = vmatprep.subr.bf16.mxu0 0
    %109 = vmatpush1.bf16.msra.mxu0 %v93
    %110 = vmatprep.subr.bf16.mxu0 0
    %111 = vmatpush1.bf16.msra.mxu0 0
    %112 = vmatprep.subr.bf16.mxu0 0
    %113 = vmatpush1.bf16.msra.mxu0 0
    %114 = vmatprep.subr.bf16.mxu0 0
    %115 = vmatpush1.bf16.msra.mxu0 0
    %116 = vmatprep.subr.bf16.mxu0 0
    %117 = vmatpush1.bf16.msra.mxu0 0
    %118 = vmatprep.subr.bf16.mxu0 0
    %119 = vmatpush1.bf16.msra.mxu0 0
    %120 = vmatprep.subr.bf16.mxu0 0
    %121 = vmatpush1.bf16.msra.mxu0 0
    %122 = vmatprep.subr.bf16.mxu0 0
    %123 = vmatpush1.bf16.msra.mxu0 0
    %124 = vmatprep.subr.bf16.mxu0 0
    %125 = vmatpush1.bf16.msra.mxu0 0
    %126 = vmatprep.subr.bf16.mxu0 0
    %127 = vmatpush1.bf16.msra.mxu0 0
    %128 = vmatprep.subr.bf16.mxu0 0
    %129 = vmatpush1.bf16.msra.mxu0 0
    %130 = vmatprep.subr.bf16.mxu0 0
    %131 = vmatpush1.bf16.msra.mxu0 0
    %132 = vmatprep.subr.bf16.mxu0 0
    %133 = vmatpush1.bf16.msra.mxu0 0
    %134 = vmatprep.mubr.bf16.mxu0 0
    %135 = vmatmul.mubr.bf16.gmra.mrb[0].mxu0 %v100
    %v136 = vpop.f32.mrb[0].mxu0
    %v137 = vadd.f32 %v72, %v136
    %v138 = vpop.f32.mrb[0].mxu0
    %v139 = vpop.f32.mrb[0].mxu0
    %v140 = vpop.f32.mrb[0].mxu0
    %141 = vdwg.mxu0
    %vm142 = vcmask 818176
    %v143 = vsel %vm142, %v137, -inf
    %144 = vmax.xlane.f32.xlu0 %v143
    %v145 = vpop.xlane.xlu0 %144
    %v146 = vsub.f32 %v137, %v145
    %v147 = vmul.f32 %v146, 1.442695
    %v148 = vpow.pop %v147
    %v149 = vpack.c.bf16 %v148, %v148
    %v150 = vld [vmem:[#allocation7] sm:$0xf]
    %v151 = vld [vmem:[#allocation7 + $0x4] sm:$0xf]
    %v152 = vld [vmem:[#allocation7 + $0x8] sm:$0xf]
    %v153 = vld [vmem:[#allocation7 + $0xc] sm:$0xf]
    %v154 = vld [vmem:[#allocation7 + $0x10] sm:$0xf]
    %v155 = vld [vmem:[#allocation7 + $0x14] sm:$0xf]
    %v156 = vld [vmem:[#allocation7 + $0x18] sm:$0xf]
    %v157 = vld [vmem:[#allocation7 + $0x1c] sm:$0xf]
    %v158 = vld [vmem:[#allocation7 + $0x20] sm:$0xf]
    %v159 = vld [vmem:[#allocation7 + $0x24] sm:$0xf]
    %v160 = vld [vmem:[#allocation7 + $0x28] sm:$0xf]
    %v161 = vld [vmem:[#allocation7 + $0x2c] sm:$0xf]
    %v162 = vld [vmem:[#allocation7 + $0x30] sm:$0x3]
    %v176 = vunpack.c.l.b16 %v150
    %v177 = vunpack.c.l.b16 %v151
    %v178 = vunpack.c.l.b16 %v152
    %v179 = vunpack.c.l.b16 %v153
    %v180 = vunpack.c.l.b16 %v154
    %v181 = vunpack.c.l.b16 %v155
    %v182 = vunpack.c.l.b16 %v156
    %v183 = vunpack.c.l.b16 %v157
    %v184 = vunpack.c.l.b16 %v158
    %v185 = vunpack.c.l.b16 %v159
    %v186 = vunpack.c.l.b16 %v160
    %v187 = vunpack.c.l.b16 %v161
    %v188 = vunpack.c.l.b16 %v162
    %v189 = vpack.c.b16 %v177, %v176
    %v190 = vpack.c.b16 %v179, %v178
    %v191 = vpack.c.b16 %v181, %v180
    %v192 = vpack.c.b16 %v183, %v182
    %v193 = vpack.c.b16 %v185, %v184
    %v194 = vpack.c.b16 %v187, %v186
    %v195 = vpack.c.b16 %v188, %v188
    %v203 = vsel %vm142, %v149, 0
    %vm205 = vcmask 1041408
    %v207 = vsel %vm205, %v195, 0
    %209 = vmatprep.subr.bf16.mxu0 0
    %210 = vmatpush1.bf16.msra.mxu0 %v189
    %211 = vmatprep.subr.bf16.mxu0 0
    %212 = vmatpush1.bf16.msra.mxu0 %v190
    %213 = vmatprep.subr.bf16.mxu0 0
    %214 = vmatpush1.bf16.msra.mxu0 %v191
    %215 = vmatprep.subr.bf16.mxu0 0
    %216 = vmatpush1.bf16.msra.mxu0 %v192
    %217 = vmatprep.subr.bf16.mxu0 0
    %218 = vmatpush1.bf16.msra.mxu0 %v193
    %219 = vmatprep.subr.bf16.mxu0 0
    %220 = vmatpush1.bf16.msra.mxu0 %v194
    %221 = vmatprep.subr.bf16.mxu0 0
    %222 = vmatpush1.bf16.msra.mxu0 %v207
    %223 = vmatprep.subr.bf16.mxu0 0
    %224 = vmatpush1.bf16.msra.mxu0 0
    %225 = vmatprep.subr.bf16.mxu0 0
    %226 = vmatpush1.bf16.msra.mxu0 0
    %227 = vmatprep.subr.bf16.mxu0 0
    %228 = vmatpush1.bf16.msra.mxu0 0
    %229 = vmatprep.subr.bf16.mxu0 0
    %230 = vmatpush1.bf16.msra.mxu0 0
    %231 = vmatprep.subr.bf16.mxu0 0
    %232 = vmatpush1.bf16.msra.mxu0 0
    %233 = vmatprep.subr.bf16.mxu0 0
    %234 = vmatpush1.bf16.msra.mxu0 0
    %235 = vmatprep.subr.bf16.mxu0 0
    %236 = vmatpush1.bf16.msra.mxu0 0
    %237 = vmatprep.subr.bf16.mxu0 0
    %238 = vmatpush1.bf16.msra.mxu0 0
    %239 = vmatprep.subr.bf16.mxu0 0
    %240 = vmatpush1.bf16.msra.mxu0 0
    %241 = vmatprep.mubr.bf16.mxu0 0
    %242 = vmatmul.mubr.bf16.gmra.mrb[0].mxu0 %v203
    %v243 = vpop.f32.mrb[0].mxu0
    %v244 = vadd.f32 0.0, %v243
    %v245 = vpop.f32.mrb[0].mxu0
    %v246 = vpop.f32.mrb[0].mxu0
    %v247 = vpop.f32.mrb[0].mxu0
    %248 = vdwg.mxu0
    %v249 = vmax.f32 %v244, 1e-30
    %v250 = vrcp.pop %v249
    %v251 = vmul.f32 %v148, %v250
    %252 = vst.msk [vmem:[#allocation8] sm:$0xff] %vm142, %v251
    // Predicated region
    $region30: #{tpu_custom_call.1} parent=1 // pred_check
      _
    $region31: #{tpu_custom_call.1} parent=1 // pred_check_branch
      %254 = sbr.rel (0) target = $region33
    $region32: #{tpu_custom_call.1} parent=1 // pred_region
      %s256 = ssub.s32 128, 128
      %257 = vsyncadd [#allocation4], %s256
      %s259 = sshll.u32 [#allocation8], 4
      %s260 = int_to_ptr.vmem [resolvable:$true] %s259
      %262 = dma.vmem_to_hbm [thread:$0]  %s260, 128, %s4, [#allocation4]
    $region33: #{tpu_custom_call.1} parent=1 // pred_fallthru
      _
    // Predicated region
    $region34: #{tpu_custom_call.1} parent=1 // pred_check
      _
    $region35: #{tpu_custom_call.1} parent=1 // pred_check_branch
      %264 = sbr.rel (0) target = $region37
    $region36: #{tpu_custom_call.1} parent=1 // pred_region
      %265 = dma.done [#allocation4], 128
    $region37: #{tpu_custom_call.1} parent=1 // pred_fallthru
      _
    %266 = vsyncpa [#allocation3], 1
    %267 = vsyncpa [#allocation6], 1
    %268 = vsyncpa [#allocation4], 1

</llo_original>
